<compile_context>
chip_gen: v5e
topology: v5e:2x2
jax: 0.10.0
libtpu: 0.0.40
codegen_flags: <defaults>
</compile_context>

<pallas_src>
import jax
import jax.numpy as jnp
from jax.experimental import pallas as pl
from jax.experimental.pallas import tpu as pltpu


def _round_up(x, m):
    return ((x + m - 1) // m) * m


def _vmem_capacity_bytes():
    try:
        cap = getattr(pltpu.get_tpu_info(), "vmem_capacity_bytes", None)
        if cap:
            return int(cap)
    except Exception:
        pass
    return 64 * 1024 * 1024  # conservative: v7x per-TensorCore VMEM


def _min_sublane(itemsize):
    # Minimum second-to-last block dim for dense layouts (f32:8, bf16:16, int8:32).
    return {4: 8, 2: 16, 1: 32}.get(itemsize, 8)


def _flatten_head_kernel(x_ref, w_ref, b_ref, o_ref):
    # x_ref: [tile_m, nf]   w_ref: [nf, tile_n]   b_ref: [1, tile_n]
    acc = jnp.dot(x_ref[...], w_ref[...], preferred_element_type=jnp.float32)
    o_ref[...] = (acc + b_ref[...]).astype(o_ref.dtype)


def _reference(x, weight, bias):
    # flatten(start_dim=-1) and dropout(p=0) are identities.
    return jnp.matmul(x, weight.T) + bias


def _pick_tiles(M, nf, N_p, x_isz, w_isz, o_isz, min_m, budget):
    """Choose (tile_m, tile_n, footprint) so the double-buffered footprint fits."""

    def footprint(tm, tn):
        return (2 * tm * nf * x_isz      # x block (double-buffered)
                + 2 * nf * tn * w_isz    # weight block (resident when tn == N_p)
                + 2 * tn * 4             # bias block
                + 2 * tm * tn * o_isz)   # output block

    # tile_n candidates: all of N_p (resident weight -- the common case), then
    # smaller 128-multiples that divide N_p.
    tn_cands = [N_p] + [t for t in (2048, 1024, 512, 256, 128)
                        if t < N_p and N_p % t == 0]

    # tile_m candidates: powers of two capped at the row count (rounded to the
    # sublane minimum), largest first.
    m_cap = _round_up(max(M, 1), min_m)
    tm_cands, t = [], 1024
    while t >= min_m:
        tm_cands.append(min(t, m_cap))
        t //= 2
    tm_cands = list(dict.fromkeys(tm_cands))   # dedupe, keep descending order

    for tn in tn_cands:
        fitting = [tm for tm in tm_cands if footprint(tm, tn) <= budget]
        if not fitting:
            continue

        def waste(tm):
            return (pl.cdiv(M, tm) * tm - M) / max(M, 1)

        # Prefer <=5% wasted rows in the partial last M block ...
        low_waste = [tm for tm in fitting if waste(tm) <= 0.05] or fitting
        # ... and >=2 M blocks so both v7x TensorCores get work (megacore).
        multi = [tm for tm in low_waste if pl.cdiv(M, tm) >= 2]
        tm = (multi or low_waste)[0]
        return tm, tn, footprint(tm, tn)

    # Last resort: smallest tiles (problem is tiny / weight enormous).
    return min_m, 128, footprint(min_m, 128)


def flatten_head_forward(x, weight, bias, *, use_pallas=None):
    """FlattenHead forward: flatten(-1) [identity] -> Linear(nf, tw) -> dropout(0).

    x:      [..., nf]
    weight: [target_window, nf]   (PyTorch nn.Linear layout)
    bias:   [target_window]
    """
    *lead, nf = x.shape
    tw = weight.shape[0]
    M = 1
    for d in lead:
        M *= d

    # Degenerate / tiny problems: plain XLA is strictly faster than the
    # pallas_call dispatch + pad/slice overhead.
    degenerate = (M == 0) or (nf == 0) or (tw == 0)
    if use_pallas is None:
        use_pallas = (not degenerate) and (M * nf >= (1 << 15))
    if degenerate or not use_pallas:
        return _reference(x, weight, bias)

    x_flat = x.reshape(M, nf)              # flatten(start_dim=-1) is the identity
    out_dtype = x.dtype

    N_p = _round_up(tw, 128)               # lane-dense output => unmasked vst
    min_m = _min_sublane(x.dtype.itemsize)

    vmem_cap = _vmem_capacity_bytes()
    budget = int(vmem_cap * 0.7)
    tile_m, tile_n, fp_bytes = _pick_tiles(
        M, nf, N_p,
        x.dtype.itemsize, weight.dtype.itemsize, jnp.dtype(out_dtype).itemsize,
        min_m, budget)

    grid_m = pl.cdiv(M, tile_m)            # partial last M block handled by Pallas
    grid_n = N_p // tile_n

    # One-time, off-hot-path weight/bias prep: pad target_window to N_p and
    # transpose the weight to [nf, N_p] so the in-kernel dot is MXU-native.
    w_t = jnp.pad(weight, ((0, N_p - tw), (0, 0))).T
    b_p = jnp.pad(bias, (0, N_p - tw)).reshape(1, N_p)

    vmem_limit = int(min(vmem_cap * 0.9,
                         max(fp_bytes + (fp_bytes >> 1), 32 * 1024 * 1024)))

    cost = pl.CostEstimate(
        flops=2 * M * N_p * nf,
        transcendentals=0,
        bytes_accessed=(x_flat.size * x_flat.dtype.itemsize
                        + w_t.size * w_t.dtype.itemsize
                        + b_p.size * b_p.dtype.itemsize
                        + M * N_p * jnp.dtype(out_dtype).itemsize))

    out_p = pl.pallas_call(
        _flatten_head_kernel,
        out_shape=jax.ShapeDtypeStruct((M, N_p), out_dtype),
        grid=(grid_m, grid_n),
        in_specs=[
            pl.BlockSpec((tile_m, nf), lambda i, j: (i, 0)),   # x (streamed over M)
            pl.BlockSpec((nf, tile_n), lambda i, j: (0, j)),   # W^T (VMEM-resident if grid_n==1)
            pl.BlockSpec((1, tile_n), lambda i, j: (0, j)),    # bias
        ],
        out_specs=pl.BlockSpec((tile_m, tile_n), lambda i, j: (i, j)),
        compiler_params=pltpu.CompilerParams(
            dimension_semantics=("parallel", "parallel"),
            vmem_limit_bytes=vmem_limit),
        cost_estimate=cost,
    )(x_flat, w_t, b_p)

    out = out_p[:, :tw]                    # drop lane padding on target_window
    # TODO(synk): nn.Dropout with head_dropout > 0 in training mode is not
    # implemented; with the module default p=0 (and in eval) it is the identity.
    return out.reshape(*lead, tw)


def _bf16_representable(a):
    # Make f32 test data exactly representable in bf16 so default-precision MXU
    # results match the XLA reference to ~f32 accumulation error.
    return a.astype(jnp.bfloat16).astype(jnp.float32)


if __name__ == "__main__":
    # Small shapes consistent with the module: batch=2, n_vars=4, nf=32, target_window=8.
    batch, n_vars, nf, target_window = 2, 4, 32, 8

    key = jax.random.PRNGKey(0)
    k_x, k_w, k_b = jax.random.split(key, 3)

    x = _bf16_representable(jax.random.normal(k_x, (batch, n_vars, nf), jnp.float32))
    bound = 1.0 / (nf ** 0.5)
    weight = _bf16_representable(jax.random.uniform(
        k_w, (target_window, nf), jnp.float32, minval=-bound, maxval=bound))
    bias = jax.random.uniform(k_b, (target_window,), jnp.float32,
                              minval=-bound, maxval=bound)

    # Force the Pallas path (the auto heuristic would use the tiny-problem fallback).
    out = jax.block_until_ready(flatten_head_forward(x, weight, bias, use_pallas=True))
    ref = x @ weight.T + bias
    assert out.shape == (batch, n_vars, target_window)
    assert jnp.allclose(out, ref, atol=1e-4, rtol=1e-4)

    # Second case: ragged M (partial last block) and non-128-multiple nf / tw.
    b2, v2, nf2, tw2 = 3, 7, 200, 24
    x2 = _bf16_representable(jax.random.normal(k_x, (b2, v2, nf2), jnp.float32))
    bound2 = 1.0 / (nf2 ** 0.5)
    w2 = _bf16_representable(jax.random.uniform(
        k_w, (tw2, nf2), jnp.float32, minval=-bound2, maxval=bound2))
    bias2 = jax.random.uniform(k_b, (tw2,), jnp.float32, minval=-bound2, maxval=bound2)
    out2 = jax.block_until_ready(flatten_head_forward(x2, w2, bias2, use_pallas=True))
    ref2 = x2 @ w2.T + bias2
    assert out2.shape == (b2, v2, tw2)
    assert jnp.allclose(out2, ref2, atol=1e-4, rtol=1e-4)

    # Auto path (tiny problem -> plain-XLA fallback) agrees as well.
    out3 = jax.block_until_ready(flatten_head_forward(x, weight, bias))
    assert jnp.allclose(out3, ref, atol=1e-4, rtol=1e-4)

    print("KERNEL_OK")
</pallas_src>

<mosaic_0001>
module attributes {stable_mosaic.version = 11 : i64} {
  func.func @_flatten_head_kernel(%arg0: i32, %arg1: i32, %arg2: memref<8x32xf32, #tpu.memory_space<vmem>>, %arg3: memref<32x128xf32, #tpu.memory_space<vmem>>, %arg4: memref<1x128xf32, #tpu.memory_space<vmem>>, %arg5: memref<8x128xf32, #tpu.memory_space<vmem>>) attributes {dimension_semantics = [#tpu.dimension_semantics<parallel>, #tpu.dimension_semantics<parallel>], iteration_bounds = array<i64: 1, 1>, scalar_prefetch = 0 : i64, scratch_operands = 0 : i64, tpu.core_type = #tpu.core_type<tc>, window_params = [{transform_indices = @transform_0, window_bounds = array<i64: 8, 32>}, {transform_indices = @transform_1, window_bounds = array<i64: 32, 128>}, {transform_indices = @transform_2, window_bounds = array<i64: 1, 128>}, {transform_indices = @transform_3, window_bounds = array<i64: 8, 128>}]} {
    %c0 = arith.constant 0 : index
    %c0_0 = arith.constant 0 : index
    %0 = vector.load %arg2[%c0, %c0_0] : memref<8x32xf32, #tpu.memory_space<vmem>>, vector<8x32xf32>
    %c0_1 = arith.constant 0 : index
    %c0_2 = arith.constant 0 : index
    %1 = vector.load %arg3[%c0_1, %c0_2] : memref<32x128xf32, #tpu.memory_space<vmem>>, vector<32x128xf32>
    %cst = arith.constant dense<0.000000e+00> : vector<8x128xf32>
    %2 = tpu.matmul %0, %1, %cst {dimension_numbers = #tpu.dot_dimension_numbers<[1], [0], [0], [1], [0, 0, 1, 1], [], []>} : vector<8x32xf32>, vector<32x128xf32>, vector<8x128xf32> -> vector<8x128xf32>
    %c0_3 = arith.constant 0 : index
    %c0_4 = arith.constant 0 : index
    %3 = vector.load %arg4[%c0_3, %c0_4] : memref<1x128xf32, #tpu.memory_space<vmem>>, vector<1x128xf32>
    %4 = vector.broadcast %3 : vector<1x128xf32> to vector<8x128xf32>
    %5 = arith.addf %2, %4 : vector<8x128xf32>
    %c0_5 = arith.constant 0 : index
    %c0_6 = arith.constant 0 : index
    %6 = vector.load %arg5[%c0_5, %c0_6] : memref<8x128xf32, #tpu.memory_space<vmem>>, vector<8x128xf32>
    tpu.vector_store %arg5[%c0_5, %c0_6], %5 {strides = array<i32>} : memref<8x128xf32, #tpu.memory_space<vmem>>, vector<8x128xf32>,
    return
  }
  func.func @transform_0(%arg0: i32, %arg1: i32) -> (i32, i32) {
    %c0_i32 = arith.constant 0 : i32
    %c0_i32_0 = arith.constant 0 : i32
    return %arg0, %c0_i32 : i32, i32
  }
  func.func @transform_1(%arg0: i32, %arg1: i32) -> (i32, i32) {
    %c0_i32 = arith.constant 0 : i32
    %c0_i32_0 = arith.constant 0 : i32
    return %c0_i32, %arg1 : i32, i32
  }
  func.func @transform_2(%arg0: i32, %arg1: i32) -> (i32, i32) {
    %c0_i32 = arith.constant 0 : i32
    %c0_i32_0 = arith.constant 0 : i32
    return %c0_i32, %arg1 : i32, i32
  }
  func.func @transform_3(%arg0: i32, %arg1: i32) -> (i32, i32) {
    %c0_i32 = arith.constant 0 : i32
    return %arg0, %arg1 : i32, i32
  }
}

</mosaic_0001>

<llo_original>
// kernel: tpu_custom_call.1
$region0: #{tpu_custom_call.1}
  #allocation0 [shape = 'u32[]', space=smem, size = 0x4, offset = 0x4, fixed_abs, tag = 'smem constant byte address 0x4 - core index']
  #allocation1 [shape = 'u32[72,128]{1,0:T(1,128)}', space=vmem, size = 0x9000, scoped, tag = 'internal scratch']
  %s0 = inlined_call_operand.hbm [shape: f32[8,32], index: 0, kind: input, shape index: {}]
  %s1 = inlined_call_operand.hbm [shape: f32[32,128], index: 1, kind: input, shape index: {}]
  %s2 = inlined_call_operand.vmem [shape: f32[1,128], index: 2, kind: input, shape index: {}]
  %s3 = inlined_call_operand.hbm [shape: f32[8,128], index: 3, kind: output, shape index: {}]
  %s4 = sld [smem:[#allocation0]]
  $region30: #{tpu_custom_call.1} parent=0
    _
  %s6 = ssub.s32 1, %s4
  %s7 = scalar_select 0, %s6, %s4
  $region1: #{tpu_custom_call.1} parent=0
    #allocation2 [shape = 'u8[4096]{0}', space=vmem, size = 0x1000, scoped, tag = 'input window, operand 0, single buffered']
    #allocation3 [shape = 's32[1]{0}', space=sflag, size = 0x4, scoped, tag = 'scoped memory for tpu_custom_call.1']
    #allocation4 [shape = 's32[1]{0}', space=sflag, size = 0x4, scoped, tag = 'scoped memory for tpu_custom_call.1']
    #allocation5 [shape = 'u8[16384]{0}', space=vmem, size = 0x4000, scoped, tag = 'input window, operand 1, single buffered']
    #allocation6 [shape = 's32[1]{0}', space=sflag, size = 0x4, scoped, tag = 'scoped memory for tpu_custom_call.1']
    #allocation7 [shape = 'u8[4096]{0}', space=vmem, size = 0x1000, scoped, tag = 'output window, operand 0, single buffered']
    %8 = vsyncpa [#allocation3], 0
    %9 = vsyncpa [#allocation6], 0
    %10 = vsyncpa [#allocation4], 0
    // Predicated region
    $region2: #{tpu_custom_call.1} parent=1 // pred_check
      _
    $region3: #{tpu_custom_call.1} parent=1 // pred_check_branch
      %12 = sbr.rel (0) target = $region5
    $region4: #{tpu_custom_call.1} parent=1 // pred_region
      %14 = vsyncadd [#allocation3], 0
      %s16 = sshll.u32 %s0, 4
      %s17 = int_to_ptr.hbm [resolvable:$true] %s16
      %s18 = sshll.u32 [#allocation2], 4
      %s19 = int_to_ptr.vmem [resolvable:$true] %s18
      %21 = dma.hbm_to_vmem [thread:$0]  %s17, 128, %s19, [#allocation3]
    $region5: #{tpu_custom_call.1} parent=1 // pred_fallthru
      _
    // Predicated region
    $region6: #{tpu_custom_call.1} parent=1 // pred_check
      _
    $region7: #{tpu_custom_call.1} parent=1 // pred_check_branch
      %23 = sbr.rel (0) target = $region9
    $region8: #{tpu_custom_call.1} parent=1 // pred_region
      %25 = vsyncadd [#allocation6], 0
      %s26 = sshll.u32 %s1, 4
      %s27 = int_to_ptr.hbm [resolvable:$true] %s26
      %s28 = sshll.u32 [#allocation5], 4
      %s29 = int_to_ptr.vmem [resolvable:$true] %s28
      %34 = dma.hbm_to_vmem [thread:$0]  %s27, 512, %s29, [#allocation6], 128, 128, 8
    $region9: #{tpu_custom_call.1} parent=1 // pred_fallthru
      _
    // Predicated region
    $region10: #{tpu_custom_call.1} parent=1 // pred_check
      _
    $region11: #{tpu_custom_call.1} parent=1 // pred_check_branch
      %36 = sbr.rel (0) target = $region13
    $region12: #{tpu_custom_call.1} parent=1 // pred_region
      _
    $region13: #{tpu_custom_call.1} parent=1 // pred_fallthru
      _
    // Predicated region
    $region14: #{tpu_custom_call.1} parent=1 // pred_check
      _
    $region15: #{tpu_custom_call.1} parent=1 // pred_check_branch
      %38 = sbr.rel (0) target = $region17
    $region16: #{tpu_custom_call.1} parent=1 // pred_region
      %40 = dma.done [#allocation3], 128
    $region17: #{tpu_custom_call.1} parent=1 // pred_fallthru
      _
    // Predicated region
    $region18: #{tpu_custom_call.1} parent=1 // pred_check
      _
    $region19: #{tpu_custom_call.1} parent=1 // pred_check_branch
      %42 = sbr.rel (0) target = $region21
    $region20: #{tpu_custom_call.1} parent=1 // pred_region
      %44 = dma.done [#allocation6], 512
    $region21: #{tpu_custom_call.1} parent=1 // pred_fallthru
      _
    %v45 = vld [vmem:[#allocation2] sm:$0xff]
    %v46 = vld [vmem:[#allocation5] sm:$0xff]
    %v47 = vld [vmem:[#allocation5 + $0x8] sm:$0xff]
    %v48 = vld [vmem:[#allocation5 + $0x10] sm:$0xff]
    %v49 = vld [vmem:[#allocation5 + $0x18] sm:$0xff]
    %v50 = vld [vmem:[%s2] sm:$0x1]
    %v52 = vperm.slane %v50, 0
    %vm54 = vcmask 261120
    %v56 = vsel %vm54, %v45, 0
    %58 = vmatpush.msra.mxu0 0.0
    %59 = vmatpush.msra.mxu0 0.0
    %60 = vmatpush.msra.mxu0 0.0
    %61 = vmatpush.msra.mxu0 0.0
    %62 = vmatpush.msra.mxu0 0.0
    %63 = vmatpush.msra.mxu0 0.0
    %64 = vmatpush.msra.mxu0 0.0
    %65 = vmatpush.msra.mxu0 0.0
    %66 = vmatpush.msra.mxu0 0.0
    %67 = vmatpush.msra.mxu0 0.0
    %68 = vmatpush.msra.mxu0 0.0
    %69 = vmatpush.msra.mxu0 0.0
    %70 = vmatpush.msra.mxu0 %v49
    %71 = vmatpush.msra.mxu0 %v48
    %72 = vmatpush.msra.mxu0 %v47
    %73 = vmatpush.msra.mxu0 %v46
    %74 = vmatmul.f32.gmra.mxu0 %v56
    %v75 = vpop.f32.mrf.mxu0
    %v76 = vadd.f32 %v52, %v75
    %77 = vdwg.mxu0
    %78 = vst [vmem:[#allocation7] sm:$0xff] %v76
    // Predicated region
    $region22: #{tpu_custom_call.1} parent=1 // pred_check
      _
    $region23: #{tpu_custom_call.1} parent=1 // pred_check_branch
      %80 = sbr.rel (0) target = $region25
    $region24: #{tpu_custom_call.1} parent=1 // pred_region
      %82 = vsyncadd [#allocation4], 0
      %s84 = sshll.u32 [#allocation7], 4
      %s85 = int_to_ptr.vmem [resolvable:$true] %s84
      %s86 = sshll.u32 %s3, 4
      %s87 = int_to_ptr.hbm [resolvable:$true] %s86
      %89 = dma.vmem_to_hbm [thread:$0]  %s85, 128, %s87, [#allocation4]
    $region25: #{tpu_custom_call.1} parent=1 // pred_fallthru
      _
    // Predicated region
    $region26: #{tpu_custom_call.1} parent=1 // pred_check
      _
    $region27: #{tpu_custom_call.1} parent=1 // pred_check_branch
      %91 = sbr.rel (0) target = $region29
    $region28: #{tpu_custom_call.1} parent=1 // pred_region
      %93 = dma.done [#allocation4], 128
    $region29: #{tpu_custom_call.1} parent=1 // pred_fallthru
      _
    %94 = vsyncpa [#allocation3], 1
    %95 = vsyncpa [#allocation6], 1
    %96 = vsyncpa [#allocation4], 1

</llo_original>
